<compile_context>
chip_gen: v6e
topology: v6e:2x2x1
jax: 0.10.0
libtpu: 0.0.40
codegen_flags: <defaults>
</compile_context>

<pallas_src>
import jax
import jax.numpy as jnp
from jax.experimental import pallas as pl
from jax.experimental.pallas import tpu as pltpu

# Module hyper-parameters (ConvTranspose2d(2, 7, 4, stride=2, padding=1))
C_IN, C_OUT, K, STRIDE, PAD = 2, 7, 4, 2, 1
# Consistent small shapes: x1 (1,2,16,16) -> conv_transpose -> (1,7,32,32) == x2
H_IN = W_IN = 16
H_OUT = (H_IN - 1) * STRIDE - 2 * PAD + K          # 32
W_OUT = (W_IN - 1) * STRIDE - 2 * PAD + K          # 32
HH, WH = H_OUT // 2, W_OUT // 2                    # 16, 16  per-phase spatial
NPIX = HH * WH                                     # 256     lane-dense last dim
NTAP = C_IN * 2 * 2                                # 8 taps contribute per phase
PAD_T = K - 1 - PAD                                # 2 (only used by the reference)

INV_SQRT2 = 0.7071067811865476


def convt_gelu_kernel(w_ref, p_ref, x2_ref, o_ref):
    # w_ref : (4, C_OUT, NTAP+1)  per-phase flipped weights, last column = bias
    # p_ref : (4, NTAP+1, NPIX)   per-phase im2col patches, last row = ones
    # x2_ref: (4, C_OUT, NPIX)    residual, phase-split
    # o_ref : (4, C_OUT, NPIX)    output, phase-split (lane-dense)
    for p in range(4):                       # static unroll: 4 tiny MXU dots
        acc = jnp.dot(w_ref[p], p_ref[p], preferred_element_type=jnp.float32)
        v1 = acc + x2_ref[p]
        # exact GELU expansion exactly as written in the PyTorch forward
        o_ref[p] = (v1 * 0.5) * (jax.lax.erf(v1 * INV_SQRT2) + 1.0)


def model_forward(x1, x2, weight, bias):
    # x1: (1, C_IN, 16, 16)   x2: (1, C_OUT, 32, 32)
    # weight: (C_IN, C_OUT, K, K) -- PyTorch ConvTranspose2d layout; bias: (C_OUT,)
    x = x1[0]
    xpad = jnp.pad(x, ((0, 0), (1, 1), (1, 1)))                  # (C_IN, 18, 18)
    # flipped + transposed weight: wf[co, ci, ky, kx] = W[ci, co, K-1-ky, K-1-kx]
    wf = jnp.flip(weight, axis=(2, 3)).transpose(1, 0, 2, 3)     # (C_OUT, C_IN, K, K)

    # --- layout plumbing only (no arithmetic): phase im2col + flat weights ---
    # out[co, 2m+py, 2n+px] = sum_{ci,dy,dx} xpad[ci, m+py+dy, n+px+dx]
    #                                        * wf[co, ci, 2dy+py, 2dx+px] + bias
    ones_row = jnp.ones((1, NPIX), x1.dtype)
    pats, wmats = [], []
    for py in range(2):
        for px in range(2):
            taps, wcols = [], []
            for ci in range(C_IN):
                for dy in range(2):
                    for dx in range(2):
                        win = xpad[ci, py + dy: py + dy + HH, px + dx: px + dx + WH]
                        taps.append(win.reshape(1, NPIX))
                        wcols.append(wf[:, ci, 2 * dy + py, 2 * dx + px][:, None])
            taps.append(ones_row)                    # folds bias into the matmul
            wcols.append(bias[:, None])
            pats.append(jnp.concatenate(taps, axis=0))     # (NTAP+1, NPIX)
            wmats.append(jnp.concatenate(wcols, axis=1))   # (C_OUT, NTAP+1)
    patches = jnp.stack(pats, axis=0)                # (4, NTAP+1, NPIX)
    wmat = jnp.stack(wmats, axis=0)                  # (4, C_OUT, NTAP+1)

    # phase-split residual: x2p[2*py+px, co, m*WH+n] = x2[0, co, 2m+py, 2n+px]
    x2p = (x2[0].reshape(C_OUT, HH, 2, WH, 2)
                .transpose(2, 4, 0, 1, 3)
                .reshape(4, C_OUT, NPIX))

    out_ph = pl.pallas_call(
        convt_gelu_kernel,
        out_shape=jax.ShapeDtypeStruct((4, C_OUT, NPIX), jnp.float32),
        in_specs=[pl.BlockSpec(memory_space=pltpu.MemorySpace.VMEM)] * 3,
        out_specs=pl.BlockSpec(memory_space=pltpu.MemorySpace.VMEM),
    )(wmat, patches, x2p)

    # un-split the phases: (4, C_OUT, 256) -> (C_OUT, 32, 32) -> NCHW
    out = (out_ph.reshape(2, 2, C_OUT, HH, WH)
                 .transpose(2, 3, 0, 4, 1)
                 .reshape(C_OUT, H_OUT, W_OUT))
    return out[None]


def reference(x1, x2, weight, bias):
    # Pure-JAX reference (transposed conv via lhs_dilation) for correctness check.
    wf = jnp.flip(weight, axis=(2, 3)).transpose(1, 0, 2, 3)
    conv = jax.lax.conv_general_dilated(
        x1, wf, window_strides=(1, 1),
        padding=((PAD_T, PAD_T), (PAD_T, PAD_T)),
        lhs_dilation=(STRIDE, STRIDE),
        dimension_numbers=("NCHW", "OIHW", "NCHW"))
    v1 = conv + bias.reshape(1, C_OUT, 1, 1) + x2
    return (v1 * 0.5) * (jax.lax.erf(v1 * INV_SQRT2) + 1.0)


if __name__ == "__main__":
    key = jax.random.PRNGKey(0)
    k1, k2, k3, k4 = jax.random.split(key, 4)
    x1 = jax.random.normal(k1, (1, C_IN, H_IN, W_IN), jnp.float32)
    x2 = jax.random.normal(k2, (1, C_OUT, H_OUT, W_OUT), jnp.float32)
    # deterministic parameter init (uniform, same bound style as PyTorch default)
    bound = 1.0 / (C_IN * K * K) ** 0.5
    weight = jax.random.uniform(k3, (C_IN, C_OUT, K, K), jnp.float32, -bound, bound)
    bias = jax.random.uniform(k4, (C_OUT,), jnp.float32, -bound, bound)

    out = jax.jit(model_forward)(x1, x2, weight, bias)
    out = jax.block_until_ready(out)

    ref = reference(x1, x2, weight, bias)
    assert out.shape == (1, C_OUT, H_OUT, W_OUT)
    assert jnp.allclose(out, ref, atol=1e-4, rtol=1e-4), "kernel/reference mismatch"
    print("KERNEL_OK")
</pallas_src>

<mosaic_0001>
module attributes {stable_mosaic.version = 11 : i64} {
  func.func @convt_gelu_kernel(%arg0: memref<4x7x9xf32, #tpu.memory_space<vmem>>, %arg1: memref<4x9x256xf32, #tpu.memory_space<vmem>>, %arg2: memref<4x7x256xf32, #tpu.memory_space<vmem>>, %arg3: memref<4x7x256xf32, #tpu.memory_space<vmem>>) attributes {dimension_semantics = [], scalar_prefetch = 0 : i64, scratch_operands = 0 : i64, tpu.core_type = #tpu.core_type<tc>} {
    %c0 = arith.constant 0 : index
    %c0_0 = arith.constant 0 : index
    %c0_1 = arith.constant 0 : index
    %0 = vector.load %arg0[%c0, %c0_0, %c0_1] : memref<4x7x9xf32, #tpu.memory_space<vmem>>, vector<1x7x9xf32>
    %1 = vector.shape_cast %0 : vector<1x7x9xf32> to vector<7x9xf32>
    %c0_2 = arith.constant 0 : index
    %c0_3 = arith.constant 0 : index
    %c0_4 = arith.constant 0 : index
    %2 = vector.load %arg1[%c0_2, %c0_3, %c0_4] : memref<4x9x256xf32, #tpu.memory_space<vmem>>, vector<1x9x256xf32>
    %3 = vector.shape_cast %2 : vector<1x9x256xf32> to vector<9x256xf32>
    %cst = arith.constant dense<0.000000e+00> : vector<7x256xf32>
    %4 = tpu.matmul %1, %3, %cst {dimension_numbers = #tpu.dot_dimension_numbers<[1], [0], [0], [1], [0, 0, 1, 1], [], []>} : vector<7x9xf32>, vector<9x256xf32>, vector<7x256xf32> -> vector<7x256xf32>
    %c0_5 = arith.constant 0 : index
    %c0_6 = arith.constant 0 : index
    %c0_7 = arith.constant 0 : index
    %5 = vector.load %arg2[%c0_5, %c0_6, %c0_7] : memref<4x7x256xf32, #tpu.memory_space<vmem>>, vector<1x7x256xf32>
    %6 = vector.shape_cast %5 : vector<1x7x256xf32> to vector<7x256xf32>
    %7 = arith.addf %4, %6 : vector<7x256xf32>
    %cst_8 = arith.constant 5.000000e-01 : f32
    %8 = vector.broadcast %cst_8 : f32 to vector<7x256xf32>
    %9 = arith.mulf %7, %8 : vector<7x256xf32>
    %cst_9 = arith.constant 0.707106769 : f32
    %10 = vector.broadcast %cst_9 : f32 to vector<7x256xf32>
    %11 = arith.mulf %7, %10 : vector<7x256xf32>
    %12 = math.erf %11 : vector<7x256xf32>
    %cst_10 = arith.constant 1.000000e+00 : f32
    %13 = vector.broadcast %cst_10 : f32 to vector<7x256xf32>
    %14 = arith.addf %12, %13 : vector<7x256xf32>
    %15 = arith.mulf %9, %14 : vector<7x256xf32>
    %c0_11 = arith.constant 0 : index
    %c0_12 = arith.constant 0 : index
    %c0_13 = arith.constant 0 : index
    %16 = vector.load %arg3[%c0_11, %c0_12, %c0_13] : memref<4x7x256xf32, #tpu.memory_space<vmem>>, vector<1x7x256xf32>
    %17 = vector.shape_cast %16 : vector<1x7x256xf32> to vector<7x256xf32>
    %18 = vector.shape_cast %15 : vector<7x256xf32> to vector<1x7x256xf32>
    tpu.vector_store %arg3[%c0_11, %c0_12, %c0_13], %18 {strides = array<i32>} : memref<4x7x256xf32, #tpu.memory_space<vmem>>, vector<1x7x256xf32>,
    %c1 = arith.constant 1 : index
    %c0_14 = arith.constant 0 : index
    %c0_15 = arith.constant 0 : index
    %19 = vector.load %arg0[%c1, %c0_14, %c0_15] : memref<4x7x9xf32, #tpu.memory_space<vmem>>, vector<1x7x9xf32>
    %20 = vector.shape_cast %19 : vector<1x7x9xf32> to vector<7x9xf32>
    %c1_16 = arith.constant 1 : index
    %c0_17 = arith.constant 0 : index
    %c0_18 = arith.constant 0 : index
    %21 = vector.load %arg1[%c1_16, %c0_17, %c0_18] : memref<4x9x256xf32, #tpu.memory_space<vmem>>, vector<1x9x256xf32>
    %22 = vector.shape_cast %21 : vector<1x9x256xf32> to vector<9x256xf32>
    %cst_19 = arith.constant dense<0.000000e+00> : vector<7x256xf32>
    %23 = tpu.matmul %20, %22, %cst_19 {dimension_numbers = #tpu.dot_dimension_numbers<[1], [0], [0], [1], [0, 0, 1, 1], [], []>} : vector<7x9xf32>, vector<9x256xf32>, vector<7x256xf32> -> vector<7x256xf32>
    %c1_20 = arith.constant 1 : index
    %c0_21 = arith.constant 0 : index
    %c0_22 = arith.constant 0 : index
    %24 = vector.load %arg2[%c1_20, %c0_21, %c0_22] : memref<4x7x256xf32, #tpu.memory_space<vmem>>, vector<1x7x256xf32>
    %25 = vector.shape_cast %24 : vector<1x7x256xf32> to vector<7x256xf32>
    %26 = arith.addf %23, %25 : vector<7x256xf32>
    %cst_23 = arith.constant 5.000000e-01 : f32
    %27 = vector.broadcast %cst_23 : f32 to vector<7x256xf32>
    %28 = arith.mulf %26, %27 : vector<7x256xf32>
    %cst_24 = arith.constant 0.707106769 : f32
    %29 = vector.broadcast %cst_24 : f32 to vector<7x256xf32>
    %30 = arith.mulf %26, %29 : vector<7x256xf32>
    %31 = math.erf %30 : vector<7x256xf32>
    %cst_25 = arith.constant 1.000000e+00 : f32
    %32 = vector.broadcast %cst_25 : f32 to vector<7x256xf32>
    %33 = arith.addf %31, %32 : vector<7x256xf32>
    %34 = arith.mulf %28, %33 : vector<7x256xf32>
    %c1_26 = arith.constant 1 : index
    %c0_27 = arith.constant 0 : index
    %c0_28 = arith.constant 0 : index
    %35 = vector.load %arg3[%c1_26, %c0_27, %c0_28] : memref<4x7x256xf32, #tpu.memory_space<vmem>>, vector<1x7x256xf32>
    %36 = vector.shape_cast %35 : vector<1x7x256xf32> to vector<7x256xf32>
    %37 = vector.shape_cast %34 : vector<7x256xf32> to vector<1x7x256xf32>
    tpu.vector_store %arg3[%c1_26, %c0_27, %c0_28], %37 {strides = array<i32>} : memref<4x7x256xf32, #tpu.memory_space<vmem>>, vector<1x7x256xf32>,
    %c2 = arith.constant 2 : index
    %c0_29 = arith.constant 0 : index
    %c0_30 = arith.constant 0 : index
    %38 = vector.load %arg0[%c2, %c0_29, %c0_30] : memref<4x7x9xf32, #tpu.memory_space<vmem>>, vector<1x7x9xf32>
    %39 = vector.shape_cast %38 : vector<1x7x9xf32> to vector<7x9xf32>
    %c2_31 = arith.constant 2 : index
    %c0_32 = arith.constant 0 : index
    %c0_33 = arith.constant 0 : index
    %40 = vector.load %arg1[%c2_31, %c0_32, %c0_33] : memref<4x9x256xf32, #tpu.memory_space<vmem>>, vector<1x9x256xf32>
    %41 = vector.shape_cast %40 : vector<1x9x256xf32> to vector<9x256xf32>
    %cst_34 = arith.constant dense<0.000000e+00> : vector<7x256xf32>
    %42 = tpu.matmul %39, %41, %cst_34 {dimension_numbers = #tpu.dot_dimension_numbers<[1], [0], [0], [1], [0, 0, 1, 1], [], []>} : vector<7x9xf32>, vector<9x256xf32>, vector<7x256xf32> -> vector<7x256xf32>
    %c2_35 = arith.constant 2 : index
    %c0_36 = arith.constant 0 : index
    %c0_37 = arith.constant 0 : index
    %43 = vector.load %arg2[%c2_35, %c0_36, %c0_37] : memref<4x7x256xf32, #tpu.memory_space<vmem>>, vector<1x7x256xf32>
    %44 = vector.shape_cast %43 : vector<1x7x256xf32> to vector<7x256xf32>
    %45 = arith.addf %42, %44 : vector<7x256xf32>
    %cst_38 = arith.constant 5.000000e-01 : f32
    %46 = vector.broadcast %cst_38 : f32 to vector<7x256xf32>
    %47 = arith.mulf %45, %46 : vector<7x256xf32>
    %cst_39 = arith.constant 0.707106769 : f32
    %48 = vector.broadcast %cst_39 : f32 to vector<7x256xf32>
    %49 = arith.mulf %45, %48 : vector<7x256xf32>
    %50 = math.erf %49 : vector<7x256xf32>
    %cst_40 = arith.constant 1.000000e+00 : f32
    %51 = vector.broadcast %cst_40 : f32 to vector<7x256xf32>
    %52 = arith.addf %50, %51 : vector<7x256xf32>
    %53 = arith.mulf %47, %52 : vector<7x256xf32>
    %c2_41 = arith.constant 2 : index
    %c0_42 = arith.constant 0 : index
    %c0_43 = arith.constant 0 : index
    %54 = vector.load %arg3[%c2_41, %c0_42, %c0_43] : memref<4x7x256xf32, #tpu.memory_space<vmem>>, vector<1x7x256xf32>
    %55 = vector.shape_cast %54 : vector<1x7x256xf32> to vector<7x256xf32>
    %56 = vector.shape_cast %53 : vector<7x256xf32> to vector<1x7x256xf32>
    tpu.vector_store %arg3[%c2_41, %c0_42, %c0_43], %56 {strides = array<i32>} : memref<4x7x256xf32, #tpu.memory_space<vmem>>, vector<1x7x256xf32>,
    %c3 = arith.constant 3 : index
    %c0_44 = arith.constant 0 : index
    %c0_45 = arith.constant 0 : index
    %57 = vector.load %arg0[%c3, %c0_44, %c0_45] : memref<4x7x9xf32, #tpu.memory_space<vmem>>, vector<1x7x9xf32>
    %58 = vector.shape_cast %57 : vector<1x7x9xf32> to vector<7x9xf32>
    %c3_46 = arith.constant 3 : index
    %c0_47 = arith.constant 0 : index
    %c0_48 = arith.constant 0 : index
    %59 = vector.load %arg1[%c3_46, %c0_47, %c0_48] : memref<4x9x256xf32, #tpu.memory_space<vmem>>, vector<1x9x256xf32>
    %60 = vector.shape_cast %59 : vector<1x9x256xf32> to vector<9x256xf32>
    %cst_49 = arith.constant dense<0.000000e+00> : vector<7x256xf32>
    %61 = tpu.matmul %58, %60, %cst_49 {dimension_numbers = #tpu.dot_dimension_numbers<[1], [0], [0], [1], [0, 0, 1, 1], [], []>} : vector<7x9xf32>, vector<9x256xf32>, vector<7x256xf32> -> vector<7x256xf32>
    %c3_50 = arith.constant 3 : index
    %c0_51 = arith.constant 0 : index
    %c0_52 = arith.constant 0 : index
    %62 = vector.load %arg2[%c3_50, %c0_51, %c0_52] : memref<4x7x256xf32, #tpu.memory_space<vmem>>, vector<1x7x256xf32>
    %63 = vector.shape_cast %62 : vector<1x7x256xf32> to vector<7x256xf32>
    %64 = arith.addf %61, %63 : vector<7x256xf32>
    %cst_53 = arith.constant 5.000000e-01 : f32
    %65 = vector.broadcast %cst_53 : f32 to vector<7x256xf32>
    %66 = arith.mulf %64, %65 : vector<7x256xf32>
    %cst_54 = arith.constant 0.707106769 : f32
    %67 = vector.broadcast %cst_54 : f32 to vector<7x256xf32>
    %68 = arith.mulf %64, %67 : vector<7x256xf32>
    %69 = math.erf %68 : vector<7x256xf32>
    %cst_55 = arith.constant 1.000000e+00 : f32
    %70 = vector.broadcast %cst_55 : f32 to vector<7x256xf32>
    %71 = arith.addf %69, %70 : vector<7x256xf32>
    %72 = arith.mulf %66, %71 : vector<7x256xf32>
    %c3_56 = arith.constant 3 : index
    %c0_57 = arith.constant 0 : index
    %c0_58 = arith.constant 0 : index
    %73 = vector.load %arg3[%c3_56, %c0_57, %c0_58] : memref<4x7x256xf32, #tpu.memory_space<vmem>>, vector<1x7x256xf32>
    %74 = vector.shape_cast %73 : vector<1x7x256xf32> to vector<7x256xf32>
    %75 = vector.shape_cast %72 : vector<7x256xf32> to vector<1x7x256xf32>
    tpu.vector_store %arg3[%c3_56, %c0_57, %c0_58], %75 {strides = array<i32>} : memref<4x7x256xf32, #tpu.memory_space<vmem>>, vector<1x7x256xf32>,
    return
  }
}

</mosaic_0001>

<llo_original>
// kernel: squeeze.73
$region0: #{squeeze.73}
  %s0 = inlined_call_operand.vmem [shape: f32[1,1,16,16], index: 0, kind: input, shape index: {}]
  %s1 = inlined_call_operand.vmem [shape: f32[1,256], index: 1, kind: output, shape index: {}]
  $region1: #{squeeze.73} parent=0
    #allocation0 [shape = 'u8[8192]{0}', space=vmem, size = 0x2000, scoped, tag = 'scoped mem for output reshape']
    %s2 = smov 3
    %v3 = vld [vmem:[%s0] ss:$8 sm:%s2]
    %vm4 = vcmask 130048
    %5 = vst.msk [vmem:[#allocation0] ss:$8 sm:$0x3] %vm4, %v3
    %s6 = scalar_lea.vmem %s0, 7
    %s7 = smov 3
    %v8 = vld [vmem:[%s6] ss:$8 sm:%s7]
    %9 = vrot.lane.b32.xlu0 %v8, 112
    %v10 = vpop.permute.xlu0 %9
    %vm11 = vcmask 1048448
    %12 = vst.msk [vmem:[#allocation0] ss:$8 sm:$0x3] %vm11, %v10
    %s13 = scalar_lea.vmem %s0, 6
    %s14 = smov 3
    %v15 = vld [vmem:[%s13] ss:$8 sm:%s14]
    %16 = vrot.lane.b32.xlu0 %v15, 96
    %v17 = vpop.permute.xlu0 %16
    %vm18 = vcmask 917248
    %19 = vst.msk [vmem:[#allocation0] ss:$8 sm:$0x3] %vm18, %v17
    %s20 = scalar_lea.vmem %s0, 5
    %s21 = smov 3
    %v22 = vld [vmem:[%s20] ss:$8 sm:%s21]
    %23 = vrot.lane.b32.xlu0 %v22, 80
    %v24 = vpop.permute.xlu0 %23
    %vm25 = vcmask 786048
    %26 = vst.msk [vmem:[#allocation0] ss:$8 sm:$0x3] %vm25, %v24
    %s27 = scalar_lea.vmem %s0, 4
    %s28 = smov 3
    %v29 = vld [vmem:[%s27] ss:$8 sm:%s28]
    %30 = vrot.lane.b32.xlu0 %v29, 64
    %v31 = vpop.permute.xlu0 %30
    %vm32 = vcmask 654848
    %33 = vst.msk [vmem:[#allocation0] ss:$8 sm:$0x3] %vm32, %v31
    %s34 = scalar_lea.vmem %s0, 3
    %s35 = smov 3
    %v36 = vld [vmem:[%s34] ss:$8 sm:%s35]
    %37 = vrot.lane.b32.xlu0 %v36, 48
    %v38 = vpop.permute.xlu0 %37
    %vm39 = vcmask 523648
    %40 = vst.msk [vmem:[#allocation0] ss:$8 sm:$0x3] %vm39, %v38
    %s41 = scalar_lea.vmem %s0, 2
    %s42 = smov 3
    %v43 = vld [vmem:[%s41] ss:$8 sm:%s42]
    %44 = vrot.lane.b32.xlu0 %v43, 32
    %v45 = vpop.permute.xlu0 %44
    %vm46 = vcmask 392448
    %47 = vst.msk [vmem:[#allocation0] ss:$8 sm:$0x3] %vm46, %v45
    %s48 = scalar_lea.vmem %s0, 1
    %s49 = smov 3
    %v50 = vld [vmem:[%s48] ss:$8 sm:%s49]
    %51 = vrot.lane.b32.xlu0 %v50, 16
    %v52 = vpop.permute.xlu0 %51
    %vm53 = vcmask 261248
    %54 = vst.msk [vmem:[#allocation0] ss:$8 sm:$0x3] %vm53, %v52
    %s56 = sshll.u32 1, 1
    %s57 = ssub.s32 %s56, 1
    %v59 = vld [vmem:[#allocation0] sm:%s57]
    %s60 = sshll.u32 1, 1
    %s61 = ssub.s32 %s60, 1
    %62 = vst [vmem:[%s1] sm:%s61] %v59
    %s63 = scalar_lea.vmem [#allocation0], 8
    %v64 = vld [vmem:[%s63] sm:%s57]
    %s65 = sshll.u32 1, 1
    %s66 = ssub.s32 %s65, 1
    %s67 = scalar_lea.vmem %s1, 1
    %68 = vst [vmem:[%s67] sm:%s66] %v64

// kernel: squeeze.75
$region0: #{squeeze.75}
  %s0 = inlined_call_operand.vmem [shape: f32[1,16,16], index: 0, kind: input, shape index: {}]
  %s1 = inlined_call_operand.vmem [shape: f32[1,256], index: 1, kind: output, shape index: {}]
  $region1: #{squeeze.75} parent=0
    #allocation0 [shape = 'u8[8192]{0}', space=vmem, size = 0x2000, scoped, tag = 'scoped mem for output reshape']
    %s2 = smov 3
    %v3 = vld [vmem:[%s0] ss:$8 sm:%s2]
    %vm4 = vcmask 130048
    %5 = vst.msk [vmem:[#allocation0] ss:$8 sm:$0x3] %vm4, %v3
    %s6 = scalar_lea.vmem %s0, 7
    %s7 = smov 3
    %v8 = vld [vmem:[%s6] ss:$8 sm:%s7]
    %9 = vrot.lane.b32.xlu0 %v8, 112
    %v10 = vpop.permute.xlu0 %9
    %vm11 = vcmask 1048448
    %12 = vst.msk [vmem:[#allocation0] ss:$8 sm:$0x3] %vm11, %v10
    %s13 = scalar_lea.vmem %s0, 6
    %s14 = smov 3
    %v15 = vld [vmem:[%s13] ss:$8 sm:%s14]
    %16 = vrot.lane.b32.xlu0 %v15, 96
    %v17 = vpop.permute.xlu0 %16
    %vm18 = vcmask 917248
    %19 = vst.msk [vmem:[#allocation0] ss:$8 sm:$0x3] %vm18, %v17
    %s20 = scalar_lea.vmem %s0, 5
    %s21 = smov 3
    %v22 = vld [vmem:[%s20] ss:$8 sm:%s21]
    %23 = vrot.lane.b32.xlu0 %v22, 80
    %v24 = vpop.permute.xlu0 %23
    %vm25 = vcmask 786048
    %26 = vst.msk [vmem:[#allocation0] ss:$8 sm:$0x3] %vm25, %v24
    %s27 = scalar_lea.vmem %s0, 4
    %s28 = smov 3
    %v29 = vld [vmem:[%s27] ss:$8 sm:%s28]
    %30 = vrot.lane.b32.xlu0 %v29, 64
    %v31 = vpop.permute.xlu0 %30
    %vm32 = vcmask 654848
    %33 = vst.msk [vmem:[#allocation0] ss:$8 sm:$0x3] %vm32, %v31
    %s34 = scalar_lea.vmem %s0, 3
    %s35 = smov 3
    %v36 = vld [vmem:[%s34] ss:$8 sm:%s35]
    %37 = vrot.lane.b32.xlu0 %v36, 48
    %v38 = vpop.permute.xlu0 %37
    %vm39 = vcmask 523648
    %40 = vst.msk [vmem:[#allocation0] ss:$8 sm:$0x3] %vm39, %v38
    %s41 = scalar_lea.vmem %s0, 2
    %s42 = smov 3
    %v43 = vld [vmem:[%s41] ss:$8 sm:%s42]
    %44 = vrot.lane.b32.xlu0 %v43, 32
    %v45 = vpop.permute.xlu0 %44
    %vm46 = vcmask 392448
    %47 = vst.msk [vmem:[#allocation0] ss:$8 sm:$0x3] %vm46, %v45
    %s48 = scalar_lea.vmem %s0, 1
    %s49 = smov 3
    %v50 = vld [vmem:[%s48] ss:$8 sm:%s49]
    %51 = vrot.lane.b32.xlu0 %v50, 16
    %v52 = vpop.permute.xlu0 %51
    %vm53 = vcmask 261248
    %54 = vst.msk [vmem:[#allocation0] ss:$8 sm:$0x3] %vm53, %v52
    %s56 = sshll.u32 1, 1
    %s57 = ssub.s32 %s56, 1
    %v59 = vld [vmem:[#allocation0] sm:%s57]
    %s60 = sshll.u32 1, 1
    %s61 = ssub.s32 %s60, 1
    %62 = vst [vmem:[%s1] sm:%s61] %v59
    %s63 = scalar_lea.vmem [#allocation0], 8
    %v64 = vld [vmem:[%s63] sm:%s57]
    %s65 = sshll.u32 1, 1
    %s66 = ssub.s32 %s65, 1
    %s67 = scalar_lea.vmem %s1, 1
    %68 = vst [vmem:[%s67] sm:%s66] %v64

// kernel: model_forward.1
$region0: #{model_forward.1}
  #allocation0 [shape = 'u32[]', space=smem, size = 0x4, offset = 0x4, fixed_abs, tag = 'smem constant byte address 0x4 - core index']
  #allocation1 [shape = 'u32[144,128]{1,0:T(1,128)}', space=vmem, size = 0x12000, scoped, tag = 'internal scratch']
  %s0 = inlined_call_operand.vmem [shape: f32[4,7,9], index: 0, kind: input, shape index: {}]
  %s1 = inlined_call_operand.vmem [shape: f32[4,9,256], index: 1, kind: input, shape index: {}]
  %s2 = inlined_call_operand.vmem [shape: f32[4,7,256], index: 2, kind: input, shape index: {}]
  %s3 = inlined_call_operand.vmem [shape: f32[4,7,256], index: 3, kind: output, shape index: {}]
  %s4 = sld [smem:[#allocation0]]
  $region22: #{model_forward.1} parent=0
    _
  %s6 = ssub.s32 1, %s4
  %s7 = scalar_select 0, %s6, %s4
  // Predicated region
  $region2: #{model_forward.1} parent=0 // pred_check
    _
  $region3: #{model_forward.1} parent=0 // pred_check_branch
    %9 = sbr.rel (0) target = $region5
  $region4: #{model_forward.1} parent=0 // pred_region
    _
  $region5: #{model_forward.1} parent=0 // pred_fallthru
    _
  // Predicated region
  $region6: #{model_forward.1} parent=0 // pred_check
    _
  $region7: #{model_forward.1} parent=0 // pred_check_branch
    %11 = sbr.rel (0) target = $region9
  $region8: #{model_forward.1} parent=0 // pred_region
    _
  $region9: #{model_forward.1} parent=0 // pred_fallthru
    _
  // Predicated region
  $region10: #{model_forward.1} parent=0 // pred_check
    _
  $region11: #{model_forward.1} parent=0 // pred_check_branch
    %13 = sbr.rel (0) target = $region13
  $region12: #{model_forward.1} parent=0 // pred_region
    _
  $region13: #{model_forward.1} parent=0 // pred_fallthru
    _
  %v14 = vld [vmem:[%s0] sm:$0x7f]
  %v15 = vld [vmem:[%s1] sm:$0xff]
  %v16 = vld [vmem:[%s1 + $0x8] sm:$0xff]
  %v17 = vld [vmem:[%s1 + $0x10] sm:$0x1]
  %v18 = vld [vmem:[%s1 + $0x18] sm:$0x1]
  %v19 = vld [vmem:[%s2] sm:$0x7f]
  %v20 = vld [vmem:[%s2 + $0x8] sm:$0x7f]
  %vm21 = vcmask 72704
  %v23 = vsel %vm21, %v14, 0
  %vm25 = vcmask 1040384
  %v27 = vsel %vm25, %v17, 0
  %v30 = vsel %vm25, %v18, 0
  %32 = vmatprep.subr.mxu0 0.0
  %33 = vmatpush1.msra.mxu0 0.0
  %34 = vmatprep.subr.mxu0 0.0
  %35 = vmatpush1.msra.mxu0 0.0
  %36 = vmatprep.subr.mxu0 0.0
  %37 = vmatpush1.msra.mxu0 0.0
  %38 = vmatprep.subr.mxu0 0.0
  %39 = vmatpush1.msra.mxu0 0.0
  %40 = vmatprep.subr.mxu0 0.0
  %41 = vmatpush1.msra.mxu0 0.0
  %42 = vmatprep.subr.mxu0 0.0
  %43 = vmatpush1.msra.mxu0 0.0
  %44 = vmatprep.subr.mxu0 0.0
  %45 = vmatpush1.msra.mxu0 0.0
  %46 = vmatprep.subr.mxu0 0.0
  %47 = vmatpush1.msra.mxu0 0.0
  %48 = vmatprep.subr.mxu0 0.0
  %49 = vmatpush1.msra.mxu0 0.0
  %50 = vmatprep.subr.mxu0 0.0
  %51 = vmatpush1.msra.mxu0 0.0
  %52 = vmatprep.subr.mxu0 0.0
  %53 = vmatpush1.msra.mxu0 0.0
  %54 = vmatprep.subr.mxu0 0.0
  %55 = vmatpush1.msra.mxu0 0.0
  %56 = vmatprep.subr.mxu0 0.0
  %57 = vmatpush1.msra.mxu0 0.0
  %58 = vmatprep.subr.mxu0 0.0
  %59 = vmatpush1.msra.mxu0 0.0
  %60 = vmatprep.subr.mxu0 %v30
  %61 = vmatpush1.msra.mxu0 %v27
  %62 = vmatprep.subr.mxu0 %v16
  %63 = vmatpush1.msra.mxu0 %v15
  %64 = vmatprep.subr.mxu0 0.0
  %65 = vmatpush2.msra.mxu0 0.0
  %66 = vmatprep.subr.mxu0 0.0
  %67 = vmatpush2.msra.mxu0 0.0
  %68 = vmatprep.subr.mxu0 0.0
  %69 = vmatpush2.msra.mxu0 0.0
  %70 = vmatprep.subr.mxu0 0.0
  %71 = vmatpush2.msra.mxu0 0.0
  %72 = vmatprep.subr.mxu0 0.0
  %73 = vmatpush2.msra.mxu0 0.0
  %74 = vmatprep.subr.mxu0 0.0
  %75 = vmatpush2.msra.mxu0 0.0
  %76 = vmatprep.subr.mxu0 0.0
  %77 = vmatpush2.msra.mxu0 0.0
  %78 = vmatprep.subr.mxu0 0.0
  %79 = vmatpush2.msra.mxu0 0.0
  %80 = vmatprep.subr.mxu0 0.0
  %81 = vmatpush2.msra.mxu0 0.0
  %82 = vmatprep.subr.mxu0 0.0
  %83 = vmatpush2.msra.mxu0 0.0
  %84 = vmatprep.subr.mxu0 0.0
  %85 = vmatpush2.msra.mxu0 0.0
  %86 = vmatprep.subr.mxu0 0.0
  %87 = vmatpush2.msra.mxu0 0.0
  %88 = vmatprep.subr.mxu0 0.0
  %89 = vmatpush2.msra.mxu0 0.0
  %90 = vmatprep.subr.mxu0 0.0
  %91 = vmatpush2.msra.mxu0 0.0
  %92 = vmatprep.subr.mxu0 0.0
  %93 = vmatpush2.msra.mxu0 0.0
  %94 = vmatprep.subr.mxu0 0.0
  %95 = vmatpush2.msra.mxu0 0.0
  %96 = vmatprep.mubr.f32.mxu0 0.0
  %97 = vmatmul.mubr.f32.gmra.mxu0 %v23
  %v98 = vpop.f32.mrf.mxu0
  %v99 = vadd.f32 %v19, %v98
  %v100 = vpop.f32.mrf.mxu0
  %v101 = vadd.f32 %v20, %v100
  %102 = vdwg.mxu0
  %v103 = vmul.f32 %v99, 0.5
  %v104 = vmul.f32 %v101, 0.5
  %v105 = vmul.f32 %v99, 0.70710677
  %v106 = vmul.f32 %v101, 0.70710677
  %v107 = verf.f32.pop %v105
  %v108 = verf.f32.pop %v106
  %v109 = vadd.f32 %v107, 1.0
  %v110 = vadd.f32 %v108, 1.0
  %v111 = vmul.f32 %v103, %v109
  %v112 = vmul.f32 %v104, %v110
  %113 = vst [vmem:[%s3] sm:$0x7f] %v111
  %114 = vst [vmem:[%s3 + $0x8] sm:$0x7f] %v112
  %s115 = scalar_lea.vmem %s0, 8
  %v116 = vld [vmem:[%s115] sm:$0x7f]
  %s117 = scalar_lea.vmem %s1, 32
  %v118 = vld [vmem:[%s117] sm:$0xff]
  %v119 = vld [vmem:[%s117 + $0x8] sm:$0xff]
  %v120 = vld [vmem:[%s117 + $0x10] sm:$0x1]
  %v121 = vld [vmem:[%s117 + $0x18] sm:$0x1]
  %s122 = scalar_lea.vmem %s2, 16
  %v123 = vld [vmem:[%s122] sm:$0x7f]
  %v124 = vld [vmem:[%s122 + $0x8] sm:$0x7f]
  %v126 = vsel %vm21, %v116, 0
  %v129 = vsel %vm25, %v120, 0
  %v132 = vsel %vm25, %v121, 0
  %134 = vmatprep.subr.mxu0 0.0
  %135 = vmatpush1.msra.mxu0 0.0
  %136 = vmatprep.subr.mxu0 0.0
  %137 = vmatpush1.msra.mxu0 0.0
  %138 = vmatprep.subr.mxu0 0.0
  %139 = vmatpush1.msra.mxu0 0.0
  %140 = vmatprep.subr.mxu0 0.0
  %141 = vmatpush1.msra.mxu0 0.0
  %142 = vmatprep.subr.mxu0 0.0
  %143 = vmatpush1.msra.mxu0 0.0
  %144 = vmatprep.subr.mxu0 0.0
  %145 = vmatpush1.msra.mxu0 0.0
  %146 = vmatprep.subr.mxu0 0.0
  %147 = vmatpush1.msra.mxu0 0.0
  %148 = vmatprep.subr.mxu0 0.0
  %149 = vmatpush1.msra.mxu0 0.0
  %150 = vmatprep.subr.mxu0 0.0
  %151 = vmatpush1.msra.mxu0 0.0
  %152 = vmatprep.subr.mxu0 0.0
  %153 = vmatpush1.msra.mxu0 0.0
  %154 = vmatprep.subr.mxu0 0.0
  %155 = vmatpush1.msra.mxu0 0.0
  %156 = vmatprep.subr.mxu0 0.0
  %157 = vmatpush1.msra.mxu0 0.0
  %158 = vmatprep.subr.mxu0 0.0
  %159 = vmatpush1.msra.mxu0 0.0
  %160 = vmatprep.subr.mxu0 0.0
  %161 = vmatpush1.msra.mxu0 0.0
  %162 = vmatprep.subr.mxu0 %v132
  %163 = vmatpush1.msra.mxu0 %v129
  %164 = vmatprep.subr.mxu0 %v119
  %165 = vmatpush1.msra.mxu0 %v118
  %166 = vmatprep.subr.mxu0 0.0
  %167 = vmatpush2.msra.mxu0 0.0
  %168 = vmatprep.subr.mxu0 0.0
  %169 = vmatpush2.msra.mxu0 0.0
  %170 = vmatprep.subr.mxu0 0.0
  %171 = vmatpush2.msra.mxu0 0.0
  %172 = vmatprep.subr.mxu0 0.0
  %173 = vmatpush2.msra.mxu0 0.0
  %174 = vmatprep.subr.mxu0 0.0
  %175 = vmatpush2.msra.mxu0 0.0
  %176 = vmatprep.subr.mxu0 0.0
  %177 = vmatpush2.msra.mxu0 0.0
  %178 = vmatprep.subr.mxu0 0.0
  %179 = vmatpush2.msra.mxu0 0.0
  %180 = vmatprep.subr.mxu0 0.0
  %181 = vmatpush2.msra.mxu0 0.0
  %182 = vmatprep.subr.mxu0 0.0
  %183 = vmatpush2.msra.mxu0 0.0
  %184 = vmatprep.subr.mxu0 0.0
  %185 = vmatpush2.msra.mxu0 0.0
  %186 = vmatprep.subr.mxu0 0.0
  %187 = vmatpush2.msra.mxu0 0.0
  %188 = vmatprep.subr.mxu0 0.0
  %189 = vmatpush2.msra.mxu0 0.0
  %190 = vmatprep.subr.mxu0 0.0
  %191 = vmatpush2.msra.mxu0 0.0
  %192 = vmatprep.subr.mxu0 0.0
  %193 = vmatpush2.msra.mxu0 0.0
  %194 = vmatprep.subr.mxu0 0.0
  %195 = vmatpush2.msra.mxu0 0.0
  %196 = vmatprep.subr.mxu0 0.0
  %197 = vmatpush2.msra.mxu0 0.0
  %198 = vmatprep.mubr.f32.mxu0 0.0
  %199 = vmatmul.mubr.f32.gmra.mxu0 %v126
  %v200 = vpop.f32.mrf.mxu0
  %v201 = vadd.f32 %v123, %v200
  %v202 = vpop.f32.mrf.mxu0
  %v203 = vadd.f32 %v124, %v202
  %204 = vdwg.mxu0
  %v205 = vmul.f32 %v201, 0.5
  %v206 = vmul.f32 %v203, 0.5
  %v207 = vmul.f32 %v201, 0.70710677
  %v208 = vmul.f32 %v203, 0.70710677
  %v209 = verf.f32.pop %v207
  %v210 = verf.f32.pop %v208
  %v211 = vadd.f32 %v209, 1.0
  %v212 = vadd.f32 %v210, 1.0
  %v213 = vmul.f32 %v205, %v211
  %v214 = vmul.f32 %v206, %v212
  %s215 = scalar_lea.vmem %s3, 16
  %216 = vst [vmem:[%s215] sm:$0x7f] %v213
  %217 = vst [vmem:[%s215 + $0x8] sm:$0x7f] %v214
  %s218 = scalar_lea.vmem %s0, 16
  %v219 = vld [vmem:[%s218] sm:$0x7f]
  %s220 = scalar_lea.vmem %s1, 64
  %v221 = vld [vmem:[%s220] sm:$0xff]
  %v222 = vld [vmem:[%s220 + $0x8] sm:$0xff]
  %v223 = vld [vmem:[%s220 + $0x10] sm:$0x1]
  %v224 = vld [vmem:[%s220 + $0x18] sm:$0x1]
  %s225 = scalar_lea.vmem %s2, 32
  %v226 = vld [vmem:[%s225] sm:$0x7f]
  %v227 = vld [vmem:[%s225 + $0x8] sm:$0x7f]
  %v229 = vsel %vm21, %v219, 0
  %v232 = vsel %vm25, %v223, 0
  %v235 = vsel %vm25, %v224, 0
  %237 = vmatprep.subr.mxu0 0.0
  %238 = vmatpush1.msra.mxu0 0.0
  %239 = vmatprep.subr.mxu0 0.0
  %240 = vmatpush1.msra.mxu0 0.0
  %241 = vmatprep.subr.mxu0 0.0
  %242 = vmatpush1.msra.mxu0 0.0
  %243 = vmatprep.subr.mxu0 0.0
  %244 = vmatpush1.msra.mxu0 0.0
  %245 = vmatprep.subr.mxu0 0.0
  %246 = vmatpush1.msra.mxu0 0.0
  %247 = vmatprep.subr.mxu0 0.0
  %248 = vmatpush1.msra.mxu0 0.0
  %249 = vmatprep.subr.mxu0 0.0
  %250 = vmatpush1.msra.mxu0 0.0
  %251 = vmatprep.subr.mxu0 0.0
  %252 = vmatpush1.msra.mxu0 0.0
  %253 = vmatprep.subr.mxu0 0.0
  %254 = vmatpush1.msra.mxu0 0.0
  %255 = vmatprep.subr.mxu0 0.0
  %256 = vmatpush1.msra.mxu0 0.0
  %257 = vmatprep.subr.mxu0 0.0
  %258 = vmatpush1.msra.mxu0 0.0
  %259 = vmatprep.subr.mxu0 0.0
  %260 = vmatpush1.msra.mxu0 0.0
  %261 = vmatprep.subr.mxu0 0.0
  %262 = vmatpush1.msra.mxu0 0.0
  %263 = vmatprep.subr.mxu0 0.0
  %264 = vmatpush1.msra.mxu0 0.0
  %265 = vmatprep.subr.mxu0 %v235
  %266 = vmatpush1.msra.mxu0 %v232
  %267 = vmatprep.subr.mxu0 %v222
  %268 = vmatpush1.msra.mxu0 %v221
  %269 = vmatprep.subr.mxu0 0.0
  %270 = vmatpush2.msra.mxu0 0.0
  %271 = vmatprep.subr.mxu0 0.0
  %272 = vmatpush2.msra.mxu0 0.0
  %273 = vmatprep.subr.mxu0 0.0
  %274 = vmatpush2.msra.mxu0 0.0
  %275 = vmatprep.subr.mxu0 0.0
  %276 = vmatpush2.msra.mxu0 0.0
  %277 = vmatprep.subr.mxu0 0.0
  %278 = vmatpush2.msra.mxu0 0.0
  %279 = vmatprep.subr.mxu0 0.0
  %280 = vmatpush2.msra.mxu0 0.0
  %281 = vmatprep.subr.mxu0 0.0
  %282 = vmatpush2.msra.mxu0 0.0
  %283 = vmatprep.subr.mxu0 0.0
  %284 = vmatpush2.msra.mxu0 0.0
  %285 = vmatprep.subr.mxu0 0.0
  %286 = vmatpush2.msra.mxu0 0.0
  %287 = vmatprep.subr.mxu0 0.0
  %288 = vmatpush2.msra.mxu0 0.0
  %289 = vmatprep.subr.mxu0 0.0
  %290 = vmatpush2.msra.mxu0 0.0
  %291 = vmatprep.subr.mxu0 0.0
  %292 = vmatpush2.msra.mxu0 0.0
  %293 = vmatprep.subr.mxu0 0.0
  %294 = vmatpush2.msra.mxu0 0.0
  %295 = vmatprep.subr.mxu0 0.0
  %296 = vmatpush2.msra.mxu0 0.0
  %297 = vmatprep.subr.mxu0 0.0
  %298 = vmatpush2.msra.mxu0 0.0
  %299 = vmatprep.subr.mxu0 0.0
  %300 = vmatpush2.msra.mxu0 0.0
  %301 = vmatprep.mubr.f32.mxu0 0.0
  %302 = vmatmul.mubr.f32.gmra.mxu0 %v229
  %v303 = vpop.f32.mrf.mxu0
  %v304 = vadd.f32 %v226, %v303
  %v305 = vpop.f32.mrf.mxu0
  %v306 = vadd.f32 %v227, %v305
  %307 = vdwg.mxu0
  %v308 = vmul.f32 %v304, 0.5
  %v309 = vmul.f32 %v306, 0.5
  %v310 = vmul.f32 %v304, 0.70710677
  %v311 = vmul.f32 %v306, 0.70710677
  %v312 = verf.f32.pop %v310
  %v313 = verf.f32.pop %v311
  %v314 = vadd.f32 %v312, 1.0
  %v315 = vadd.f32 %v313, 1.0
  %v316 = vmul.f32 %v308, %v314
  %v317 = vmul.f32 %v309, %v315
  %s318 = scalar_lea.vmem %s3, 32
  %319 = vst [vmem:[%s318] sm:$0x7f] %v316
  %320 = vst [vmem:[%s318 + $0x8] sm:$0x7f] %v317
  %s321 = scalar_lea.vmem %s0, 24
  %v322 = vld [vmem:[%s321] sm:$0x7f]
  %s323 = scalar_lea.vmem %s1, 96
  %v324 = vld [vmem:[%s323] sm:$0xff]
  %v325 = vld [vmem:[%s323 + $0x8] sm:$0xff]
  %v326 = vld [vmem:[%s323 + $0x10] sm:$0x1]
  %v327 = vld [vmem:[%s323 + $0x18] sm:$0x1]
  %s328 = scalar_lea.vmem %s2, 48
  %v329 = vld [vmem:[%s328] sm:$0x7f]
  %v330 = vld [vmem:[%s328 + $0x8] sm:$0x7f]
  %v332 = vsel %vm21, %v322, 0
  %v335 = vsel %vm25, %v326, 0
  %v338 = vsel %vm25, %v327, 0
  %340 = vmatprep.subr.mxu0 0.0
  %341 = vmatpush1.msra.mxu0 0.0
  %342 = vmatprep.subr.mxu0 0.0
  %343 = vmatpush1.msra.mxu0 0.0
  %344 = vmatprep.subr.mxu0 0.0
  %345 = vmatpush1.msra.mxu0 0.0
  %346 = vmatprep.subr.mxu0 0.0
  %347 = vmatpush1.msra.mxu0 0.0
  %348 = vmatprep.subr.mxu0 0.0
  %349 = vmatpush1.msra.mxu0 0.0
  %350 = vmatprep.subr.mxu0 0.0
  %351 = vmatpush1.msra.mxu0 0.0
  %352 = vmatprep.subr.mxu0 0.0
  %353 = vmatpush1.msra.mxu0 0.0
  %354 = vmatprep.subr.mxu0 0.0
  %355 = vmatpush1.msra.mxu0 0.0
  %356 = vmatprep.subr.mxu0 0.0
  %357 = vmatpush1.msra.mxu0 0.0
  %358 = vmatprep.subr.mxu0 0.0
  %359 = vmatpush1.msra.mxu0 0.0
  %360 = vmatprep.subr.mxu0 0.0
  %361 = vmatpush1.msra.mxu0 0.0
  %362 = vmatprep.subr.mxu0 0.0
  %363 = vmatpush1.msra.mxu0 0.0
  %364 = vmatprep.subr.mxu0 0.0
  %365 = vmatpush1.msra.mxu0 0.0
  %366 = vmatprep.subr.mxu0 0.0
  %367 = vmatpush1.msra.mxu0 0.0
  %368 = vmatprep.subr.mxu0 %v338
  %369 = vmatpush1.msra.mxu0 %v335
  %370 = vmatprep.subr.mxu0 %v325
  %371 = vmatpush1.msra.mxu0 %v324
  %372 = vmatprep.subr.mxu0 0.0
  %373 = vmatpush2.msra.mxu0 0.0
  %374 = vmatprep.subr.mxu0 0.0
  %375 = vmatpush2.msra.mxu0 0.0
  %376 = vmatprep.subr.mxu0 0.0
  %377 = vmatpush2.msra.mxu0 0.0
  %378 = vmatprep.subr.mxu0 0.0
  %379 = vmatpush2.msra.mxu0 0.0
  %380 = vmatprep.subr.mxu0 0.0
  %381 = vmatpush2.msra.mxu0 0.0
  %382 = vmatprep.subr.mxu0 0.0
  %383 = vmatpush2.msra.mxu0 0.0
  %384 = vmatprep.subr.mxu0 0.0
  %385 = vmatpush2.msra.mxu0 0.0
  %386 = vmatprep.subr.mxu0 0.0
  %387 = vmatpush2.msra.mxu0 0.0
  %388 = vmatprep.subr.mxu0 0.0
  %389 = vmatpush2.msra.mxu0 0.0
  %390 = vmatprep.subr.mxu0 0.0
  %391 = vmatpush2.msra.mxu0 0.0
  %392 = vmatprep.subr.mxu0 0.0
  %393 = vmatpush2.msra.mxu0 0.0
  %394 = vmatprep.subr.mxu0 0.0
  %395 = vmatpush2.msra.mxu0 0.0
  %396 = vmatprep.subr.mxu0 0.0
  %397 = vmatpush2.msra.mxu0 0.0
  %398 = vmatprep.subr.mxu0 0.0
  %399 = vmatpush2.msra.mxu0 0.0
  %400 = vmatprep.subr.mxu0 0.0
  %401 = vmatpush2.msra.mxu0 0.0
  %402 = vmatprep.subr.mxu0 0.0
  %403 = vmatpush2.msra.mxu0 0.0
  %404 = vmatprep.mubr.f32.mxu0 0.0
  %405 = vmatmul.mubr.f32.gmra.mxu0 %v332
  %v406 = vpop.f32.mrf.mxu0
  %v407 = vadd.f32 %v329, %v406
  %v408 = vpop.f32.mrf.mxu0
  %v409 = vadd.f32 %v330, %v408
  %410 = vdwg.mxu0
  %v411 = vmul.f32 %v407, 0.5
  %v412 = vmul.f32 %v409, 0.5
  %v413 = vmul.f32 %v407, 0.70710677
  %v414 = vmul.f32 %v409, 0.70710677
  %v415 = verf.f32.pop %v413
  %v416 = verf.f32.pop %v414
  %v417 = vadd.f32 %v415, 1.0
  %v418 = vadd.f32 %v416, 1.0
  %v419 = vmul.f32 %v411, %v417
  %v420 = vmul.f32 %v412, %v418
  %s421 = scalar_lea.vmem %s3, 48
  %422 = vst [vmem:[%s421] sm:$0x7f] %v419
  %423 = vst [vmem:[%s421 + $0x8] sm:$0x7f] %v420
  // Predicated region
  $region14: #{model_forward.1} parent=0 // pred_check
    _
  $region15: #{model_forward.1} parent=0 // pred_check_branch
    %425 = sbr.rel (0) target = $region17
  $region16: #{model_forward.1} parent=0 // pred_region
    _
  $region17: #{model_forward.1} parent=0 // pred_fallthru
    _
  // Predicated region
  $region18: #{model_forward.1} parent=0 // pred_check
    _
  $region19: #{model_forward.1} parent=0 // pred_check_branch
    %427 = sbr.rel (0) target = $region21
  $region20: #{model_forward.1} parent=0 // pred_region
    _
  $region21: #{model_forward.1} parent=0 // pred_fallthru
    _

</llo_original>
